<compile_context>
chip_gen: v6e
topology: v6e:2x2x1
jax: 0.10.0
libtpu: 0.0.40
codegen_flags: <defaults>
</compile_context>

<pallas_src>
import functools

import jax
import jax.numpy as jnp
from jax import lax
from jax.experimental import pallas as pl
from jax.experimental.pallas import tpu as pltpu

_LANE = 128
_SUBLANE_BY_ITEMSIZE = {4: 8, 2: 16, 1: 32}


def _matchshifted_kernel(left_ref, right_ref, out_ref, *, shift, width):
    # left_ref / right_ref blocks: (1, F_blk, HW)
    # out_ref block:               (1, 2, F_blk, HW)  (axis 1: 0=left, 1=right)
    l = left_ref[0]    # (F_blk, HW)
    r = right_ref[0]   # (F_blk, HW)

    if shift == 0:
        # Fast path: both halves pass through unchanged.
        out_ref[0, 0] = l
        out_ref[0, 1] = r
        return

    hw = l.shape[-1]
    # Column-within-row index on the flat H*W axis, computed at (1, HW) and
    # broadcast across the F/sublane axis by jnp.where (cheap on the VPU).
    col = lax.broadcasted_iota(jnp.int32, (1, hw), 1) % width
    keep = col >= shift                      # True where output is non-zero
    zero = jnp.zeros((), l.dtype)

    # shifted_left: zero the first `shift` columns of every row, keep the rest.
    out_ref[0, 0] = jnp.where(keep, l, zero)

    # shifted_right: out[., w] = right[., w - shift] for w >= shift, else 0.
    # A static shift on the flat axis moves element idx-shift to idx; elements
    # that cross a row boundary appear only at col < shift, which the shared
    # mask zeroes, so the result matches the per-row torch shift.
    r_shift = jnp.concatenate(
        [jnp.zeros(r.shape[:-1] + (shift,), r.dtype), r[:, : hw - shift]],
        axis=-1)
    out_ref[0, 1] = jnp.where(keep, r_shift, zero)


def _num_tensorcores():
    """Best-effort count of TensorCores sharing one Pallas grid (megacore)."""
    try:
        n = getattr(jax.devices()[0], "num_cores", None)
        return max(1, int(n)) if n else 1
    except Exception:
        return 1


def _plan_f_blocking(num_filters, hw, itemsize, batch, num_cores,
                     target_bytes=2 * 1024 * 1024):
    """Return (f_pad, f_blk).

    f_blk is a multiple of the dtype's sublane packing (or the full padded F),
    sized to <= ~target_bytes per input block.  On multi-TensorCore chips the
    total grid step count is nudged to be even; on single-core chips the
    largest legal block is kept (no pointless splitting).
    """
    sub = _SUBLANE_BY_ITEMSIZE.get(itemsize, 8)
    blk_bytes = lambda fb: fb * hw * itemsize

    if blk_bytes(num_filters) <= target_bytes:
        f_pad = num_filters                       # full-F block: always legal
    else:
        # Need to split F: pad so sublane-multiple blocks tile it exactly.
        f_pad = pl.cdiv(num_filters, sub) * sub

    legal = {d for d in range(sub, f_pad + 1, sub) if f_pad % d == 0}
    legal.add(f_pad)
    legal = sorted(legal)
    fitting = [d for d in legal if blk_bytes(d) <= target_bytes]
    f_blk = max(fitting) if fitting else min(legal)
    # TODO(synk): if even the minimal sublane block exceeds the VMEM budget
    # (enormous H*W), tile the flat H*W axis as well.

    if num_cores >= 2:
        # v7x: two TensorCores share the grid -> prefer an even step count so
        # neither core gets an idle tail on this pure-bandwidth kernel.
        steps = lambda fb: batch * (f_pad // fb)
        if steps(f_blk) < 2 or steps(f_blk) % 2:
            cands = [d for d in legal
                     if d <= f_blk and steps(d) >= 2 and steps(d) % 2 == 0]
            if cands:
                f_blk = max(cands)
    return f_pad, f_blk


def matchshifted_forward(left, right, shift: int):
    """left, right: (B, F, H, W) NCHW; returns (B, 2F, 1, H, W)."""
    assert left.shape == right.shape and left.dtype == right.dtype
    B, F, H, W = left.shape
    assert 0 <= shift <= W
    HW = H * W
    itemsize = jnp.dtype(left.dtype).itemsize

    # Lane-dense layout: flatten spatial dims and pad the flat axis to a
    # multiple of 128 lanes so stores are full-width (padding sliced off after).
    HW_pad = max(_LANE, pl.cdiv(HW, _LANE) * _LANE)
    f_pad, f_blk = _plan_f_blocking(F, HW_pad, itemsize, B, _num_tensorcores())

    def _prep(x):
        x = x.reshape(B, F, HW)
        if HW_pad != HW or f_pad != F:
            x = jnp.pad(x, ((0, 0), (0, f_pad - F), (0, HW_pad - HW)))
        return x

    left_flat = _prep(left)
    right_flat = _prep(right)

    grid = (B, f_pad // f_blk)
    kernel = functools.partial(_matchshifted_kernel, shift=shift, width=W)
    bytes_accessed = 4 * B * f_pad * HW_pad * itemsize   # 2 reads + 2 writes

    out = pl.pallas_call(
        kernel,
        out_shape=jax.ShapeDtypeStruct((B, 2, f_pad, HW_pad), left.dtype),
        grid=grid,
        in_specs=[
            pl.BlockSpec((1, f_blk, HW_pad), lambda b, f: (b, f, 0)),
            pl.BlockSpec((1, f_blk, HW_pad), lambda b, f: (b, f, 0)),
        ],
        out_specs=pl.BlockSpec((1, 2, f_blk, HW_pad), lambda b, f: (b, 0, f, 0)),
        compiler_params=pltpu.CompilerParams(
            dimension_semantics=("parallel", "parallel"),
            vmem_limit_bytes=32 * 1024 * 1024,
        ),
        cost_estimate=pl.CostEstimate(
            flops=0, transcendentals=0, bytes_accessed=bytes_accessed),
    )(left_flat, right_flat)

    if HW_pad != HW or f_pad != F:
        out = out[:, :, :F, :HW]
    # (B, 2, F, H*W) -> (B, 2F, 1, H, W): channels [0, F) = shifted_left,
    # channels [F, 2F) = shifted_right — identical to torch.cat(dim=1) + view.
    return out.reshape(B, 2 * F, 1, H, W)


def _reference(left, right, shift):
    B, F, H, W = left.shape
    sl = jnp.pad(left[:, :, :, shift:], ((0, 0), (0, 0), (0, 0), (shift, 0)))
    sr = jnp.pad(right[:, :, :, : W - shift], ((0, 0), (0, 0), (0, 0), (shift, 0)))
    return jnp.concatenate([sl, sr], axis=1).reshape(B, 2 * F, 1, H, W)


if __name__ == "__main__":
    B, F, H, W = 2, 4, 16, 16
    shift = 3

    key = jax.random.PRNGKey(0)
    k_left, k_right = jax.random.split(key)
    left = jax.random.normal(k_left, (B, F, H, W), dtype=jnp.float32)
    right = jax.random.normal(k_right, (B, F, H, W), dtype=jnp.float32)

    out = jax.block_until_ready(matchshifted_forward(left, right, shift))

    ref = _reference(left, right, shift)
    assert out.shape == (B, 2 * F, 1, H, W), out.shape
    assert out.dtype == left.dtype
    assert jnp.allclose(out, ref), "Pallas output does not match reference"

    print("KERNEL_OK")
</pallas_src>

<mosaic_0001>
module attributes {stable_mosaic.version = 11 : i64} {
  func.func @_matchshifted_kernel(%arg0: i32, %arg1: i32, %arg2: memref<1x4x256xf32, #tpu.memory_space<vmem>>, %arg3: memref<1x4x256xf32, #tpu.memory_space<vmem>>, %arg4: memref<1x2x4x256xf32, #tpu.memory_space<vmem>>) attributes {dimension_semantics = [#tpu.dimension_semantics<parallel>, #tpu.dimension_semantics<parallel>], iteration_bounds = array<i64: 2, 1>, scalar_prefetch = 0 : i64, scratch_operands = 0 : i64, tpu.core_type = #tpu.core_type<tc>, window_params = [{transform_indices = @transform_0, window_bounds = array<i64: 1, 4, 256>}, {transform_indices = @transform_1, window_bounds = array<i64: 1, 4, 256>}, {transform_indices = @transform_2, window_bounds = array<i64: 1, 2, 4, 256>}]} {
    %c0 = arith.constant 0 : index
    %c0_0 = arith.constant 0 : index
    %c0_1 = arith.constant 0 : index
    %0 = vector.load %arg2[%c0, %c0_0, %c0_1] : memref<1x4x256xf32, #tpu.memory_space<vmem>>, vector<1x4x256xf32>
    %1 = vector.shape_cast %0 : vector<1x4x256xf32> to vector<4x256xf32>
    %c0_2 = arith.constant 0 : index
    %c0_3 = arith.constant 0 : index
    %c0_4 = arith.constant 0 : index
    %2 = vector.load %arg3[%c0_2, %c0_3, %c0_4] : memref<1x4x256xf32, #tpu.memory_space<vmem>>, vector<1x4x256xf32>
    %3 = vector.shape_cast %2 : vector<1x4x256xf32> to vector<4x256xf32>
    %4 = tpu.iota {dimensions = array<i32: 1>} : vector<1x256xi32>
    %c16_i32 = arith.constant 16 : i32
    %c0_i32 = arith.constant 0 : i32
    %5 = arith.cmpi eq, %c16_i32, %c0_i32 : i32
    %c1_i32 = arith.constant 1 : i32
    %6 = arith.select %5, %c1_i32, %c16_i32 : i32
    %7 = vector.broadcast %6 : i32 to vector<1x256xi32>
    %8 = arith.remsi %4, %7 : vector<1x256xi32>
    %c0_i32_5 = arith.constant 0 : i32
    %9 = vector.broadcast %c0_i32_5 : i32 to vector<1x256xi32>
    %10 = arith.cmpi ne, %8, %9 : vector<1x256xi32>
    %c0_i32_6 = arith.constant 0 : i32
    %11 = vector.broadcast %c0_i32_6 : i32 to vector<1x256xi32>
    %12 = arith.cmpi slt, %8, %11 : vector<1x256xi32>
    %c0_i32_7 = arith.constant 0 : i32
    %13 = arith.cmpi slt, %6, %c0_i32_7 : i32
    %14 = vector.broadcast %13 : i1 to vector<1x256xi1>
    %15 = vector.broadcast %14 : vector<1x256xi1> to vector<1x256xi1>
    %16 = arith.xori %12, %15 : vector<1x256xi1>
    %17 = arith.andi %16, %10 : vector<1x256xi1>
    %18 = vector.broadcast %6 : i32 to vector<1x256xi32>
    %19 = arith.addi %8, %18 : vector<1x256xi32>
    %20 = arith.select %17, %19, %8 : vector<1x256xi1>, vector<1x256xi32>
    %c3_i32 = arith.constant 3 : i32
    %21 = vector.broadcast %c3_i32 : i32 to vector<1x256xi32>
    %22 = arith.cmpi sge, %20, %21 : vector<1x256xi32>
    %cst = arith.constant 0.000000e+00 : f32
    %23 = vector.shape_cast %22 : vector<1x256xi1> to vector<1x256xi1>
    %24 = vector.broadcast %23 : vector<1x256xi1> to vector<4x256xi1>
    %25 = vector.broadcast %cst : f32 to vector<4x256xf32>
    %26 = arith.select %24, %1, %25 : vector<4x256xi1>, vector<4x256xf32>
    %c0_8 = arith.constant 0 : index
    %c0_9 = arith.constant 0 : index
    %c0_10 = arith.constant 0 : index
    %c0_11 = arith.constant 0 : index
    %27 = vector.load %arg4[%c0_8, %c0_9, %c0_10, %c0_11] : memref<1x2x4x256xf32, #tpu.memory_space<vmem>>, vector<1x1x4x256xf32>
    %28 = vector.shape_cast %27 : vector<1x1x4x256xf32> to vector<4x256xf32>
    %29 = vector.shape_cast %26 : vector<4x256xf32> to vector<1x1x4x256xf32>
    tpu.vector_store %arg4[%c0_8, %c0_9, %c0_10, %c0_11], %29 {strides = array<i32>} : memref<1x2x4x256xf32, #tpu.memory_space<vmem>>, vector<1x1x4x256xf32>,
    %cst_12 = arith.constant 0.000000e+00 : f32
    %30 = vector.broadcast %cst_12 : f32 to vector<4x3xf32>
    %31 = vector.extract_strided_slice %3 {offsets = [0, 0], sizes = [4, 253], strides = [1, 1]} : vector<4x256xf32> to vector<4x253xf32>
    %32 = tpu.concatenate %30, %31 in 1 : vector<4x3xf32>, vector<4x253xf32> -> vector<4x256xf32>
    %cst_13 = arith.constant 0.000000e+00 : f32
    %33 = vector.shape_cast %22 : vector<1x256xi1> to vector<1x256xi1>
    %34 = vector.broadcast %33 : vector<1x256xi1> to vector<4x256xi1>
    %35 = vector.broadcast %cst_13 : f32 to vector<4x256xf32>
    %36 = arith.select %34, %32, %35 : vector<4x256xi1>, vector<4x256xf32>
    %c0_14 = arith.constant 0 : index
    %c1 = arith.constant 1 : index
    %c0_15 = arith.constant 0 : index
    %c0_16 = arith.constant 0 : index
    %37 = vector.load %arg4[%c0_14, %c1, %c0_15, %c0_16] : memref<1x2x4x256xf32, #tpu.memory_space<vmem>>, vector<1x1x4x256xf32>
    %38 = vector.shape_cast %37 : vector<1x1x4x256xf32> to vector<4x256xf32>
    %39 = vector.shape_cast %36 : vector<4x256xf32> to vector<1x1x4x256xf32>
    tpu.vector_store %arg4[%c0_14, %c1, %c0_15, %c0_16], %39 {strides = array<i32>} : memref<1x2x4x256xf32, #tpu.memory_space<vmem>>, vector<1x1x4x256xf32>,
    return
  }
  func.func @transform_0(%arg0: i32, %arg1: i32) -> (i32, i32, i32) {
    %c0_i32 = arith.constant 0 : i32
    %c0_i32_0 = arith.constant 0 : i32
    return %arg0, %arg1, %c0_i32 : i32, i32, i32
  }
  func.func @transform_1(%arg0: i32, %arg1: i32) -> (i32, i32, i32) {
    %c0_i32 = arith.constant 0 : i32
    %c0_i32_0 = arith.constant 0 : i32
    return %arg0, %arg1, %c0_i32 : i32, i32, i32
  }
  func.func @transform_2(%arg0: i32, %arg1: i32) -> (i32, i32, i32, i32) {
    %c0_i32 = arith.constant 0 : i32
    %c0_i32_0 = arith.constant 0 : i32
    %c0_i32_1 = arith.constant 0 : i32
    return %arg0, %c0_i32, %arg1, %c0_i32_0 : i32, i32, i32, i32
  }
}

</mosaic_0001>

<llo_original>
// kernel: tpu_custom_call.1
$region0: #{tpu_custom_call.1}
  #allocation0 [shape = 'u32[]', space=smem, size = 0x4, offset = 0x4, fixed_abs, tag = 'smem constant byte address 0x4 - core index']
  #allocation1 [shape = 'u32[144,128]{1,0:T(1,128)}', space=vmem, size = 0x12000, scoped, tag = 'internal scratch']
  %s0 = inlined_call_operand.hbm [shape: f32[2,4,256], index: 0, kind: input, shape index: {}]
  %s1 = inlined_call_operand.hbm [shape: f32[2,4,256], index: 1, kind: input, shape index: {}]
  %s2 = inlined_call_operand.hbm [shape: f32[2,2,4,256], index: 2, kind: output, shape index: {}]
  %s3 = sld [smem:[#allocation0]]
  $region49: #{tpu_custom_call.1} parent=0
    _
  %s5 = ssub.s32 1, %s3
  %s6 = scalar_select 0, %s5, %s3
  $region1: #{tpu_custom_call.1} parent=0
    #allocation2 [shape = 'u8[8192]{0}', space=vmem, size = 0x2000, scoped, tag = 'input window, operand 0']
    #allocation3 [shape = 's32[2]{0}', space=sflag, size = 0x8, scoped, tag = 'scoped memory for tpu_custom_call.1']
    #allocation4 [shape = 's32[2]{0}', space=sflag, size = 0x8, scoped, tag = 'scoped memory for tpu_custom_call.1']
    #allocation5 [shape = 'u8[8192]{0}', space=vmem, size = 0x2000, scoped, tag = 'input window, operand 1']
    #allocation6 [shape = 's32[2]{0}', space=sflag, size = 0x8, scoped, tag = 'scoped memory for tpu_custom_call.1']
    #allocation7 [shape = 'u8[16384]{0}', space=vmem, size = 0x4000, scoped, tag = 'output window, operand 0']
    %7 = vsyncpa [#allocation3], 0
    %s8 = scalar_lea.sflag [#allocation3], 1
    %9 = vsyncpa %s8, 0
    %10 = vsyncpa [#allocation6], 0
    %s11 = scalar_lea.sflag [#allocation6], 1
    %12 = vsyncpa %s11, 0
    %13 = vsyncpa [#allocation4], 0
    %s14 = scalar_lea.sflag [#allocation4], 1
    %15 = vsyncpa %s14, 0
    loop: start=0, step=1, limit=4
    $region2: #{tpu_custom_call.1} parent=1 // loop_pre_header
      _
    $region3: #{tpu_custom_call.1} parent=1 // loop_header
      %s17 = sphi 0, %s21
      %p18 = scmp.ge.s32.totalorder %s17, 4
      %s24 = sphi 0, %s36
      %s25 = sphi 0, %s32
      %s26 = sphi 0, %s24
      %s27 = sphi 0, %s25
      %s28 = sphi 0, %s26
      %s29 = sphi 0, %s27
      %s41 = sphi 0, %s43
      %s44 = sphi 0, %s41
      %s45 = sphi 0, %s44
      %s61 = sphi 0, %s45
      %s69 = sphi 0, %s71
      %s72 = sphi 0, %s69
      %s73 = sphi 0, %s72
      %s89 = sphi 0, %s73
      %s97 = sphi 0, %s99
      %s100 = sphi 0, %s97
      %s101 = sphi 0, %s100
      %s117 = sphi 0, %s101
    $region4: #{tpu_custom_call.1} parent=1 // loop_header_branch
      %20 = sbr.rel (%p18) target = $region8
    $region5: #{tpu_custom_call.1} parent=1 // loop_body
      %s22 = ssub.s32 %s17, 1
      %s23 = ssub.s32 %s17, 2
      %s30 = sadd.s32 1, %s25
      %p31 = scmp.ge.s32.totalorder %s30, 1
      %s32 = scalar_select %p31, 0, %s30
      %s33 = sadd.s32 1, %s24
      %s34 = scalar_select %p31, %s33, %s24
      %p35 = scmp.ge.s32.totalorder %s34, 2
      %s36 = scalar_select %p35, 0, %s34
      %s37 = ssub.s32 %s24, %s36
      %s38 = ssub.s32 %s25, %s32
      %s39 = sor.u32 %s37, %s38
      %p40 = scmp.eq.s32.totalorder %s39, 0
      %s42 = sadd.s32 %s41, 1
      %s43 = scalar_select %p40, %s41, %s42
      %p46 = pneg %p40
      %p47 = scmp.eq.s32.totalorder %s17, 1
      %p48 = por %p46, %p47
      %p49 = scmp.ne.s32.totalorder %s41, %s44
      %p50 = scmp.eq.s32.totalorder %s17, 0
      %p51 = por %p49, %p50
      %p52 = scmp.ne.s32.totalorder %s41, %s44
      %p53 = scmp.eq.s32.totalorder %s22, 1
      %p54 = por %p52, %p53
      %p55 = scmp.ne.s32.totalorder %s44, %s45
      %p56 = scmp.eq.s32.totalorder %s22, 0
      %p57 = por %p55, %p56
      %p58 = scmp.ne.s32.totalorder %s44, %s45
      %p59 = scmp.eq.s32.totalorder %s23, 1
      %p60 = por %p58, %p59
      %p62 = scmp.ne.s32.totalorder %s45, %s61
      %p63 = scmp.eq.s32.totalorder %s23, 0
      %p64 = por %p62, %p63
      %s65 = ssub.s32 %s24, %s36
      %s66 = ssub.s32 %s25, %s32
      %s67 = sor.u32 %s65, %s66
      %p68 = scmp.eq.s32.totalorder %s67, 0
      %s70 = sadd.s32 %s69, 1
      %s71 = scalar_select %p68, %s69, %s70
      %p74 = pneg %p68
      %p75 = scmp.eq.s32.totalorder %s17, 1
      %p76 = por %p74, %p75
      %p77 = scmp.ne.s32.totalorder %s69, %s72
      %p78 = scmp.eq.s32.totalorder %s17, 0
      %p79 = por %p77, %p78
      %p80 = scmp.ne.s32.totalorder %s69, %s72
      %p81 = scmp.eq.s32.totalorder %s22, 1
      %p82 = por %p80, %p81
      %p83 = scmp.ne.s32.totalorder %s72, %s73
      %p84 = scmp.eq.s32.totalorder %s22, 0
      %p85 = por %p83, %p84
      %p86 = scmp.ne.s32.totalorder %s72, %s73
      %p87 = scmp.eq.s32.totalorder %s23, 1
      %p88 = por %p86, %p87
      %p90 = scmp.ne.s32.totalorder %s73, %s89
      %p91 = scmp.eq.s32.totalorder %s23, 0
      %p92 = por %p90, %p91
      %s93 = ssub.s32 %s24, %s36
      %s94 = ssub.s32 %s25, %s32
      %s95 = sor.u32 %s93, %s94
      %p96 = scmp.eq.s32.totalorder %s95, 0
      %s98 = sadd.s32 %s97, 1
      %s99 = scalar_select %p96, %s97, %s98
      %p102 = pneg %p96
      %p103 = scmp.eq.s32.totalorder %s17, 1
      %p104 = por %p102, %p103
      %p105 = scmp.ne.s32.totalorder %s97, %s100
      %p106 = scmp.eq.s32.totalorder %s17, 0
      %p107 = por %p105, %p106
      %p108 = scmp.ne.s32.totalorder %s97, %s100
      %p109 = scmp.eq.s32.totalorder %s22, 1
      %p110 = por %p108, %p109
      %p111 = scmp.ne.s32.totalorder %s100, %s101
      %p112 = scmp.eq.s32.totalorder %s22, 0
      %p113 = por %p111, %p112
      %p114 = scmp.ne.s32.totalorder %s100, %s101
      %p115 = scmp.eq.s32.totalorder %s23, 1
      %p116 = por %p114, %p115
      %p118 = scmp.ne.s32.totalorder %s101, %s117
      %p119 = scmp.eq.s32.totalorder %s23, 0
      %p120 = por %p118, %p119
      %p121 = scmp.le.s32.totalorder 1, %s17
      %p122 = scmp.lt.s32.totalorder %s17, 3
      %p123 = pnand %p121, %p122
      %p124 = pneg %p123
      // Predicated region
      $region9: #{tpu_custom_call.1} parent=5 // pred_check
        _
      $region10: #{tpu_custom_call.1} parent=5 // pred_check_branch
        %126 = sbr.rel (%p123) target = $region12
      $region11: #{tpu_custom_call.1} parent=5 // pred_region
        %s127 = ssub.s32 %s17, 1
      $region12: #{tpu_custom_call.1} parent=5 // pred_fallthru
        _
      %p128 = scmp.lt.s32.totalorder %s17, 2
      // Predicated region
      $region13: #{tpu_custom_call.1} parent=5 // pred_check
        %p129 = pneg %p128
      $region14: #{tpu_custom_call.1} parent=5 // pred_check_branch
        %131 = sbr.rel (%p129) target = $region16
      $region15: #{tpu_custom_call.1} parent=5 // pred_region
        // Predicated region
        $region17: #{tpu_custom_call.1} parent=15 // pred_check
          %p132 = pneg %p51
        $region18: #{tpu_custom_call.1} parent=15 // pred_check_branch
          %134 = sbr.rel (%p132) target = $region20
        $region19: #{tpu_custom_call.1} parent=15 // pred_region
          %s135 = sand.u32 %s41, 1
          %s136 = scalar_lea.sflag [#allocation3], %s135
          %s137 = sand.u32 %s41, 1
          %s138 = smul.addr %s137, 8
          %s139 = scalar_lea.vmem [#allocation2], %s138
          %s141 = ssub.s32 128, 128
          %142 = vsyncadd %s136, %s141
          %s143 = smul.addr %s25, 2
          %s144 = smul.addr %s24, 2
          %s145 = sadd.s32 %s143, %s144
          %s146 = smul.addr %s145, 64
          %s147 = scalar_lea.hbm %s0, %s146
          %s149 = sshll.u32 %s139, 4
          %s150 = int_to_ptr.vmem [resolvable:$true] %s149
          %152 = dma.hbm_to_vmem [thread:$0]  %s147, 128, %s150, %s136
        $region20: #{tpu_custom_call.1} parent=15 // pred_fallthru
          _
        // Predicated region
        $region21: #{tpu_custom_call.1} parent=15 // pred_check
          %p153 = pneg %p79
        $region22: #{tpu_custom_call.1} parent=15 // pred_check_branch
          %155 = sbr.rel (%p153) target = $region24
        $region23: #{tpu_custom_call.1} parent=15 // pred_region
          %s156 = sand.u32 %s69, 1
          %s157 = scalar_lea.sflag [#allocation6], %s156
          %s158 = sand.u32 %s69, 1
          %s159 = smul.addr %s158, 8
          %s160 = scalar_lea.vmem [#allocation5], %s159
          %s162 = ssub.s32 128, 128
          %163 = vsyncadd %s157, %s162
          %s164 = smul.addr %s25, 2
          %s165 = smul.addr %s24, 2
          %s166 = sadd.s32 %s164, %s165
          %s167 = smul.addr %s166, 64
          %s168 = scalar_lea.hbm %s1, %s167
          %s170 = sshll.u32 %s160, 4
          %s171 = int_to_ptr.vmem [resolvable:$true] %s170
          %173 = dma.hbm_to_vmem [thread:$0]  %s168, 128, %s171, %s157
        $region24: #{tpu_custom_call.1} parent=15 // pred_fallthru
          _
      $region16: #{tpu_custom_call.1} parent=5 // pred_fallthru
        _
      %p174 = scmp.le.s32.totalorder 1, %s17
      %p175 = scmp.lt.s32.totalorder %s17, 3
      %p176 = pnand %p174, %p175
      %p177 = pneg %p176
      // Predicated region
      $region25: #{tpu_custom_call.1} parent=5 // pred_check
        _
      $region26: #{tpu_custom_call.1} parent=5 // pred_check_branch
        %179 = sbr.rel (%p176) target = $region28
      $region27: #{tpu_custom_call.1} parent=5 // pred_region
        %s180 = ssub.s32 %s17, 1
        %s181 = sand.u32 %s44, 1
        %s182 = scalar_lea.sflag [#allocation3], %s181
        %s183 = sand.u32 %s44, 1
        %s184 = smul.addr %s183, 8
        %s185 = scalar_lea.vmem [#allocation2], %s184
        // Predicated region
        $region29: #{tpu_custom_call.1} parent=27 // pred_check
          %p186 = pneg %p57
        $region30: #{tpu_custom_call.1} parent=27 // pred_check_branch
          %188 = sbr.rel (%p186) target = $region32
        $region31: #{tpu_custom_call.1} parent=27 // pred_region
          %189 = dma.done %s182, 128
        $region32: #{tpu_custom_call.1} parent=27 // pred_fallthru
          _
        %s190 = sand.u32 %s72, 1
        %s191 = scalar_lea.sflag [#allocation6], %s190
        %s192 = sand.u32 %s72, 1
        %s193 = smul.addr %s192, 8
        %s194 = scalar_lea.vmem [#allocation5], %s193
        // Predicated region
        $region33: #{tpu_custom_call.1} parent=27 // pred_check
          %p195 = pneg %p85
        $region34: #{tpu_custom_call.1} parent=27 // pred_check_branch
          %197 = sbr.rel (%p195) target = $region36
        $region35: #{tpu_custom_call.1} parent=27 // pred_region
          %198 = dma.done %s191, 128
        $region36: #{tpu_custom_call.1} parent=27 // pred_fallthru
          _
        %s199 = sand.u32 %s44, 1
        %s200 = scalar_lea.sflag [#allocation3], %s199
        %s201 = sand.u32 %s44, 1
        %s202 = smul.addr %s201, 8
        %s203 = scalar_lea.vmem [#allocation2], %s202
        %p204 = pneg %p57
        %p205 = pneg %p54
        %s206 = sand.u32 %s72, 1
        %s207 = scalar_lea.sflag [#allocation6], %s206
        %s208 = sand.u32 %s72, 1
        %s209 = smul.addr %s208, 8
        %s210 = scalar_lea.vmem [#allocation5], %s209
        %p211 = pneg %p85
        %p212 = pneg %p82
        %p213 = pneg %p113
        %p214 = pneg %p110
        %s215 = sand.u32 %s100, 1
        %s216 = scalar_lea.sflag [#allocation4], %s215
        %s217 = sand.u32 %s100, 1
        %s218 = smul.addr %s217, 16
        %s219 = scalar_lea.vmem [#allocation7], %s218
        %v220 = vld [vmem:[%s185] sm:$0xff]
        %v221 = vld [vmem:[%s194] sm:$0xff]
        %v222 = vlaneseq
        %v223 = vand.u32 %v222, 127
        %v224 = vadd.s32 %v223, 128
        %vm225 = vcmp.lt.s32.totalorder %v223, 0
        %v226 = vsub.s32 0, %v223
        %v227 = vsel %vm225, %v226, %v223
        %v228 = vshrl.u32 %v227, 4
        %v229 = vand.u32 %v227, 15
        %v230 = vsub.s32 0, %v229
        %v231 = vsel %vm225, %v230, %v229
        %vm232 = vcmp.lt.s32.totalorder %v224, 0
        %v233 = vsub.s32 0, %v224
        %v234 = vsel %vm232, %v233, %v224
        %v235 = vshrl.u32 %v234, 4
        %v236 = vand.u32 %v234, 15
        %v237 = vsub.s32 0, %v236
        %v238 = vsel %vm232, %v237, %v236
        %vm239 = vcmp.ne.s32.totalorder %v231, 0
        %vm240 = vcmp.ne.s32.totalorder %v238, 0
        %vm241 = vcmp.lt.s32.totalorder %v231, 0
        %vm242 = vcmp.lt.s32.totalorder %v238, 0
        %vm243 = vmand %vm241, %vm239
        %vm244 = vmand %vm242, %vm240
        %v245 = vadd.s32 %v231, 16
        %v246 = vadd.s32 %v238, 16
        %v247 = vsel %vm243, %v245, %v231
        %v248 = vsel %vm244, %v246, %v238
        %vm249 = vcmp.ge.s32.totalorder %v247, 3
        %vm250 = vcmp.ge.s32.totalorder %v248, 3
        %v251 = vsel %vm249, 1, 0
        %v252 = vsel %vm250, 1, 0
        %vm253 = vcmp.eq.s32.totalorder %v251, 1
        %vm254 = vcmp.eq.s32.totalorder %v252, 1
        %v256 = vcombine.high %v220, %v220
        %v258 = vsel %vm253, %v220, 0.0
        %v259 = vsel %vm254, %v256, 0.0
        %v262 = vcombine.low %v258, %v259
        %264 = vst [vmem:[%s219] sm:$0xff] %v262
        %v266 = vcombine.high %v221, %v221
        %267 = vrot.lane.b32.xlu0 %v221, 3
        %v268 = vpop.permute.xlu0 %267
        %269 = vrot.lane.b32.xlu0 %v266, 3
        %v270 = vpop.permute.xlu0 %269
        %vm271 = vcmask 23552
        %v272 = vsel %vm271, %v268, %v270
        %v275 = vsel %vm271, 0.0, %v268
        %v276 = vsel %vm253, %v275, 0.0
        %v277 = vsel %vm254, %v272, 0.0
        %v280 = vcombine.low %v276, %v277
        %s282 = scalar_lea.vmem %s219, 8 [#allocation7]
        %283 = vst [vmem:[%s282] sm:$0xff] %v280
        %s284 = sand.u32 %s100, 1
        %s285 = scalar_lea.sflag [#allocation4], %s284
        %s286 = sand.u32 %s100, 1
        %s287 = smul.addr %s286, 16
        %s288 = scalar_lea.vmem [#allocation7], %s287
        // Predicated region
        $region37: #{tpu_custom_call.1} parent=27 // pred_check
          %p289 = pneg %p110
        $region38: #{tpu_custom_call.1} parent=27 // pred_check_branch
          %291 = sbr.rel (%p289) target = $region40
        $region39: #{tpu_custom_call.1} parent=27 // pred_region
          %s293 = ssub.s32 256, 256
          %294 = vsyncadd %s285, %s293
          %s295 = smul.addr %s27, 2
          %s296 = smul.addr %s26, 4
          %s297 = sadd.s32 %s295, %s296
          %s298 = smul.addr %s297, 64
          %s299 = scalar_lea.hbm %s2, %s298
          %s300 = sshll.u32 %s288, 4
          %s301 = int_to_ptr.vmem [resolvable:$true] %s300
          %306 = dma.vmem_to_hbm [thread:$0]  %s301, 256, %s299, %s285, 128, 128, 8
        $region40: #{tpu_custom_call.1} parent=27 // pred_fallthru
          _
      $region28: #{tpu_custom_call.1} parent=5 // pred_fallthru
        _
      %p307 = scmp.le.s32.totalorder 2, %s17
      // Predicated region
      $region41: #{tpu_custom_call.1} parent=5 // pred_check
        %p308 = pneg %p307
      $region42: #{tpu_custom_call.1} parent=5 // pred_check_branch
        %310 = sbr.rel (%p308) target = $region44
      $region43: #{tpu_custom_call.1} parent=5 // pred_region
        %s311 = ssub.s32 %s17, 2
        // Predicated region
        $region45: #{tpu_custom_call.1} parent=43 // pred_check
          %p312 = pneg %p116
        $region46: #{tpu_custom_call.1} parent=43 // pred_check_branch
          %314 = sbr.rel (%p312) target = $region48
        $region47: #{tpu_custom_call.1} parent=43 // pred_region
          %s315 = sand.u32 %s101, 1
          %s316 = scalar_lea.sflag [#allocation4], %s315
          %s317 = sand.u32 %s101, 1
          %s318 = smul.addr %s317, 16
          %s319 = scalar_lea.vmem [#allocation7], %s318
          %320 = dma.done %s316, 256
        $region48: #{tpu_custom_call.1} parent=43 // pred_fallthru
          _
      $region44: #{tpu_custom_call.1} parent=5 // pred_fallthru
        _
    $region6: #{tpu_custom_call.1} parent=1 // loop_footer
      %s21 = sadd.s32 1, %s17
    $region7: #{tpu_custom_call.1} parent=1 // loop_footer_branch
      %16 = sbr.rel target = $region3
    $region8: #{tpu_custom_call.1} parent=1 // loop_exit
      _
    %321 = vsyncpa [#allocation3], 1
    %s322 = scalar_lea.sflag [#allocation3], 1
    %323 = vsyncpa %s322, 1
    %324 = vsyncpa [#allocation6], 1
    %s325 = scalar_lea.sflag [#allocation6], 1
    %326 = vsyncpa %s325, 1
    %327 = vsyncpa [#allocation4], 1
    %s328 = scalar_lea.sflag [#allocation4], 1
    %329 = vsyncpa %s328, 1

</llo_original>
